<compile_context>
chip_gen: v7x
topology: tpu7x:2x2x1
jax: 0.10.0
libtpu: 0.0.40
codegen_flags: <defaults>
</compile_context>

<pallas_src>
import functools

import jax
import jax.numpy as jnp
from jax import lax
from jax.experimental import pallas as pl
from jax.experimental.pallas import tpu as pltpu

# Module-level globals in the original Training_pkg/Loss_func.py (read from a
# config file there).  Deterministic synthetic values are used here.
GeoMSE_Lamba1_Penalty1 = 0.5
GeoMSE_Lamba1_Penalty2 = 0.5
GeoMSE_Gamma = 2.0

# ------------------------------ tiling config -------------------------------

_D_LANE = 128                     # lane width of the flattened elementwise bulk
_MAX_TILE_ROWS = 4096             # 4096 x 128 f32 = 2 MiB per input per buffer
_CE_TILE_BYTES = 4 * 1024 * 1024  # ~4 MiB logits tile (x2 buffers = 8 MiB VMEM)
_VMEM_LIMIT = 32 * 1024 * 1024    # explicit scoped-VMEM limit (fits v5e/v6e/v7x)


def _round_down8(x):
    return (x // 8) * 8


def _num_tensorcores():
    # TODO(synk): pltpu.get_tpu_info() does not expose a stable core count;
    # use the device-kind string (2 TensorCores/chip on v7x, 1 on v5e/v6e).
    try:
        kind = jax.devices()[0].device_kind.lower()
    except Exception:
        kind = ""
    return 2 if "v7" in kind else 1


def _grid_for(n_tiles):
    nsplit = max(1, min(_num_tensorcores(), n_tiles))
    tiles_per_split = pl.cdiv(n_tiles, nsplit)
    return nsplit, tiles_per_split


def _tile_map(tiles_per_split, n_tiles):
    # Clamp so a trailing (duplicated) tile slot never issues an OOB DMA; the
    # kernel masks it out using the *unclamped* intended tile index.
    def idx(s, i):
        return (jnp.minimum(s * tiles_per_split + i, n_tiles - 1), 0)
    return idx


def _out_map(s, i):
    return (s, 0)


# ------------------------------ Pallas kernels -------------------------------

def _accumulate_masked(elem, out_ref, n_valid_rows):
    """Accumulate row-group sums of `elem` (tile_rows, lanes) into (8, lanes),
    masking rows whose intended global row index is >= n_valid_rows."""
    rows, lanes = elem.shape
    tile = pl.program_id(0) * pl.num_programs(1) + pl.program_id(1)  # unclamped
    grow = tile * rows + lax.broadcasted_iota(jnp.int32, (rows, 1), 0)
    elem = jnp.where(grow < n_valid_rows, elem, 0.0)
    out_ref[...] += elem.reshape(rows // 8, 8, lanes).sum(axis=0)


def _mse_sum_kernel(pred_ref, tgt_ref, out_ref, *, n_valid_rows):
    @pl.when(pl.program_id(1) == 0)
    def _():
        out_ref[...] = jnp.zeros_like(out_ref)

    pred = pred_ref[...].astype(jnp.float32)
    tgt = tgt_ref[...].astype(jnp.float32)
    diff = pred - tgt
    _accumulate_masked(diff * diff, out_ref, n_valid_rows)


def _geomse_sum_kernel(pred_ref, tgt_ref, geo_ref, mean_ref, std_ref, out_ref,
                       *, n_valid_rows):
    @pl.when(pl.program_id(1) == 0)
    def _():
        out_ref[...] = jnp.zeros_like(out_ref)

    pred = pred_ref[...].astype(jnp.float32)
    tgt = tgt_ref[...].astype(jnp.float32)
    # de-normalize the geophysical species: geo * std + mean
    geo = geo_ref[...].astype(jnp.float32) * std_ref[0, 0] + mean_ref[0, 0]

    diff = pred - tgt
    # Fused MSE + penalty terms -> single accumulation per tile.
    elem = (diff * diff
            + GeoMSE_Lamba1_Penalty1 * jnp.maximum(-pred - geo, 0.0)
            + GeoMSE_Lamba1_Penalty2 * jnp.maximum(pred - GeoMSE_Gamma * geo, 0.0))
    _accumulate_masked(elem, out_ref, n_valid_rows)


def _ce_lse_sum_kernel(logits_ref, out_ref, *, n_valid_rows):
    @pl.when(pl.program_id(1) == 0)
    def _():
        out_ref[...] = jnp.zeros_like(out_ref)

    logits = logits_ref[...].astype(jnp.float32)       # (T, C), C = full width
    rows = logits.shape[0]

    m = jnp.max(logits, axis=-1, keepdims=True)
    lse = m + jnp.log(jnp.sum(jnp.exp(logits - m), axis=-1, keepdims=True))  # (T,1)

    tile = pl.program_id(0) * pl.num_programs(1) + pl.program_id(1)
    grow = tile * rows + lax.broadcasted_iota(jnp.int32, (rows, 1), 0)
    lse = jnp.where(grow < n_valid_rows, lse, 0.0)     # masks garbage/dup rows

    # TODO(synk): the (8, 1) accumulator store is a 1-lane masked store; it is
    # VMEM-resident and negligible vs the (T, C) logits stream, so left narrow.
    out_ref[...] += lse.reshape(rows // 8, 8, 1).sum(axis=0)


# ------------------------------- JAX wrappers --------------------------------

def _flatten_bulk_tail(arrs):
    """Flatten each array (free) and split into a (n_rows, 128) bulk plus a
    < 128-element tail.  Returns (mats_or_None, n_rows, tails_or_None, total)."""
    flats = [jnp.reshape(jnp.asarray(a), (-1,)) for a in arrs]
    total = int(flats[0].shape[0])
    for f in flats:
        assert int(f.shape[0]) == total, "loss inputs must have equal element counts"
    n_rows = total // _D_LANE
    rem = total - n_rows * _D_LANE
    if n_rows < 8:
        # Tiny input (< 1024 elements): no kernel bulk, everything is "tail".
        return None, 0, flats, total
    bulk = n_rows * _D_LANE
    if rem == 0:
        mats = [f.reshape(n_rows, _D_LANE) for f in flats]   # free bitcast
        tails = None
    else:
        # TODO(synk): when total % 128 != 0 this prefix slice materializes one
        # extra copy of the bulk; a 1-D BlockSpec with flat-index masking would
        # avoid it but is not wired up.
        mats = [lax.slice(f, (0,), (bulk,)).reshape(n_rows, _D_LANE) for f in flats]
        tails = [lax.slice(f, (bulk,), (total,)) for f in flats]
    return mats, n_rows, tails, total


def _streaming_sum(kernel, mats, n_rows, extra_args=(), extra_specs=()):
    """Masked f32 sum over the first n_rows rows of the (n_rows, 128) mats."""
    tile_rows = max(8, min(_MAX_TILE_ROWS, _round_down8(n_rows)))
    n_tiles = pl.cdiv(n_rows, tile_rows)
    nsplit, tiles_per_split = _grid_for(n_tiles)

    row_spec = pl.BlockSpec((tile_rows, _D_LANE),
                            _tile_map(tiles_per_split, n_tiles))
    out = pl.pallas_call(
        functools.partial(kernel, n_valid_rows=n_rows),
        out_shape=jax.ShapeDtypeStruct((nsplit * 8, _D_LANE), jnp.float32),
        grid=(nsplit, tiles_per_split),
        in_specs=[row_spec] * len(mats) + list(extra_specs),
        out_specs=pl.BlockSpec((8, _D_LANE), _out_map),
        compiler_params=pltpu.CompilerParams(
            dimension_semantics=("parallel", "arbitrary"),
            vmem_limit_bytes=_VMEM_LIMIT),
    )(*mats, *extra_args)
    return jnp.sum(out)


@functools.partial(jax.jit, static_argnames=("reduction",))
def mse_loss_pallas(pred, tgt, reduction="mean"):
    if reduction not in ("mean", "sum"):
        # TODO(synk): reduction='none' returns a per-element tensor; not wired up.
        raise NotImplementedError("reduction='none' is not implemented")
    mats, n_rows, tails, total = _flatten_bulk_tail([pred, tgt])
    total_sum = jnp.float32(0.0)
    if mats is not None:
        total_sum = total_sum + _streaming_sum(_mse_sum_kernel, mats, n_rows)
    if tails is not None:
        pt, tt = (t.astype(jnp.float32) for t in tails)
        total_sum = total_sum + jnp.sum((pt - tt) ** 2)
    if reduction == "sum":
        return total_sum
    return total_sum / jnp.float32(total)


@jax.jit
def geomse_loss_pallas(pred, tgt, geo, geo_mean, geo_std):
    mats, n_rows, tails, total = _flatten_bulk_tail([pred, tgt, geo])
    mean_s = jnp.asarray(geo_mean, jnp.float32).reshape(1, 1)
    std_s = jnp.asarray(geo_std, jnp.float32).reshape(1, 1)
    total_sum = jnp.float32(0.0)
    if mats is not None:
        smem_spec = pl.BlockSpec(memory_space=pltpu.MemorySpace.SMEM)
        total_sum = total_sum + _streaming_sum(
            _geomse_sum_kernel, mats, n_rows,
            extra_args=(mean_s, std_s), extra_specs=(smem_spec, smem_spec))
    if tails is not None:
        p, t, g = (x.astype(jnp.float32) for x in tails)
        gd = g * std_s[0, 0] + mean_s[0, 0]
        total_sum = total_sum + jnp.sum(
            (p - t) ** 2
            + GeoMSE_Lamba1_Penalty1 * jnp.maximum(-p - gd, 0.0)
            + GeoMSE_Lamba1_Penalty2 * jnp.maximum(p - GeoMSE_Gamma * gd, 0.0))
    return total_sum / jnp.float32(total)


@jax.jit
def cross_entropy_loss_pallas(logits, targets):
    logits = jnp.asarray(logits)
    assert logits.ndim == 2, "expected (N, C) logits"
    n, c = int(logits.shape[0]), int(logits.shape[1])
    tgt = jnp.asarray(targets).astype(jnp.int32).reshape(n)

    # Target-logit pick: tiny O(N) gather in the wrapper (negligible HBM
    # traffic); the kernel then streams the logits exactly once, unpadded.
    picked = jnp.take_along_axis(logits, tgt[:, None], axis=1).astype(jnp.float32)
    picked_sum = jnp.sum(picked)

    if n < 8:
        # Tiny batch (< 8 rows): plain jnp logsumexp; the kernel path needs a
        # sublane-aligned row tile.
        lse_sum = jnp.sum(jax.nn.logsumexp(logits.astype(jnp.float32), axis=-1))
    else:
        itemsize = int(jnp.dtype(logits.dtype).itemsize)
        target_rows = max(8, (_CE_TILE_BYTES // max(1, c * itemsize)) // 8 * 8)
        tile_rows = max(8, min(target_rows, _round_down8(n)))
        n_tiles = pl.cdiv(n, tile_rows)
        nsplit, tiles_per_split = _grid_for(n_tiles)

        out = pl.pallas_call(
            functools.partial(_ce_lse_sum_kernel, n_valid_rows=n),
            out_shape=jax.ShapeDtypeStruct((nsplit * 8, 1), jnp.float32),
            grid=(nsplit, tiles_per_split),
            in_specs=[pl.BlockSpec((tile_rows, c),
                                   _tile_map(tiles_per_split, n_tiles))],
            out_specs=pl.BlockSpec((8, 1), _out_map),
            compiler_params=pltpu.CompilerParams(
                dimension_semantics=("parallel", "arbitrary"),
                vmem_limit_bytes=_VMEM_LIMIT),
        )(logits)
        lse_sum = jnp.sum(out)

    return (lse_sum - picked_sum) / jnp.float32(n)


class SelfDesigned_LossFunction:
    """JAX/Pallas port of the PyTorch SelfDesigned_LossFunction module."""

    def __init__(self, losstype, size_average=None, reduce=None,
                 reduction: str = "mean"):
        self.Loss_Type = losstype
        self.reduction = reduction
        self.GeoMSE_Lamba1_Penalty1 = GeoMSE_Lamba1_Penalty1
        self.GeoMSE_Lamba1_Penalty2 = GeoMSE_Lamba1_Penalty2
        self.GeoMSE_Gamma = GeoMSE_Gamma

    def __call__(self, model_output, target, geophsical_species,
                 geopysical_mean, geopysical_std):
        if self.Loss_Type == "MSE":
            return mse_loss_pallas(model_output, target,
                                   reduction=self.reduction)
        elif self.Loss_Type == "GeoMSE":
            return geomse_loss_pallas(model_output, target,
                                      geophsical_species,
                                      geopysical_mean, geopysical_std)
        elif self.Loss_Type == "CrossEntropyLoss":
            return cross_entropy_loss_pallas(model_output, target)
        raise ValueError(f"unknown Loss_Type {self.Loss_Type}")


# -------------------------------- sanity check -------------------------------

if __name__ == "__main__":
    key = jax.random.PRNGKey(0)
    keys = jax.random.split(key, 14)

    def geomse_ref(pred, tgt, geo, mean, std):
        geo_d = geo * std + mean
        return (jnp.mean((pred - tgt) ** 2)
                + GeoMSE_Lamba1_Penalty1
                * jnp.mean(jnp.maximum(-pred - geo_d, 0.0))
                + GeoMSE_Lamba1_Penalty2
                * jnp.mean(jnp.maximum(pred - GeoMSE_Gamma * geo_d, 0.0)))

    def ce_ref(logits, classes):
        n = logits.shape[0]
        return jnp.mean(jax.nn.logsumexp(logits, axis=-1)
                        - logits[jnp.arange(n), classes])

    def check(got, want, name, rtol=1e-4, atol=1e-5):
        jax.block_until_ready(got)
        assert jnp.allclose(got, want, rtol=rtol, atol=atol), (name, got, want)

    N, D = 8, 128  # small regression batch: 8 samples x 128 features
    model_output = jax.random.normal(keys[0], (N, D), jnp.float32)
    target = jax.random.normal(keys[1], (N, D), jnp.float32)
    geo_species = jax.random.normal(keys[2], (N, D), jnp.float32)
    geo_mean = jnp.float32(0.3)
    geo_std = jnp.float32(1.2)

    # --- GeoMSE ---
    geomse_fn = SelfDesigned_LossFunction("GeoMSE")
    check(geomse_fn(model_output, target, geo_species, geo_mean, geo_std),
          geomse_ref(model_output, target, geo_species, geo_mean, geo_std),
          "geomse")

    # GeoMSE ragged (33, 77): partial last row tile + <128-element tail
    pr = jax.random.normal(keys[3], (33, 77), jnp.float32)
    tr = jax.random.normal(keys[4], (33, 77), jnp.float32)
    gr = jax.random.normal(keys[5], (33, 77), jnp.float32)
    check(geomse_fn(pr, tr, gr, geo_mean, geo_std),
          geomse_ref(pr, tr, gr, geo_mean, geo_std), "geomse_ragged")

    # GeoMSE tiny (7, 33): < 1024 elements -> jnp fallback path
    pt = jax.random.normal(keys[6], (7, 33), jnp.float32)
    tt = jax.random.normal(keys[7], (7, 33), jnp.float32)
    gt = jax.random.normal(keys[8], (7, 33), jnp.float32)
    check(geomse_fn(pt, tt, gt, geo_mean, geo_std),
          geomse_ref(pt, tt, gt, geo_mean, geo_std), "geomse_tiny")

    # --- MSE ---
    mse_fn = SelfDesigned_LossFunction("MSE")
    check(mse_fn(model_output, target, geo_species, geo_mean, geo_std),
          jnp.mean((model_output - target) ** 2), "mse_mean")

    mse_sum_fn = SelfDesigned_LossFunction("MSE", reduction="sum")
    check(mse_sum_fn(model_output, target, geo_species, geo_mean, geo_std),
          jnp.sum((model_output - target) ** 2), "mse_sum", atol=1e-3)

    check(mse_fn(pr, tr, gr, geo_mean, geo_std),
          jnp.mean((pr - tr) ** 2), "mse_ragged")

    # --- CrossEntropyLoss ---
    logits = jax.random.normal(keys[9], (N, D), jnp.float32)
    classes = jax.random.randint(keys[10], (N,), 0, D, jnp.int32)
    ce_fn = SelfDesigned_LossFunction("CrossEntropyLoss")
    check(ce_fn(logits, classes, geo_species, geo_mean, geo_std),
          ce_ref(logits, classes), "ce")

    # CE ragged (21, 33): non-128 class width + partial row tile
    logits_r = jax.random.normal(keys[11], (21, 33), jnp.float32)
    classes_r = jax.random.randint(keys[12], (21,), 0, 33, jnp.int32)
    check(ce_fn(logits_r, classes_r, geo_species, geo_mean, geo_std),
          ce_ref(logits_r, classes_r), "ce_ragged")

    # CE tiny (5, 10): < 8 rows -> jnp fallback path
    logits_t = jax.random.normal(keys[13], (5, 10), jnp.float32)
    classes_t = jax.random.randint(keys[12], (5,), 0, 10, jnp.int32)
    check(ce_fn(logits_t, classes_t, geo_species, geo_mean, geo_std),
          ce_ref(logits_t, classes_t), "ce_tiny")

    print("KERNEL_OK")
</pallas_src>

<mosaic_0001>
module attributes {stable_mosaic.version = 11 : i64} {
  func.func @_geomse_sum_kernel(%arg0: i32, %arg1: i32, %arg2: memref<8x128xf32, #tpu.memory_space<vmem>>, %arg3: memref<8x128xf32, #tpu.memory_space<vmem>>, %arg4: memref<8x128xf32, #tpu.memory_space<vmem>>, %arg5: memref<1x1xf32, #tpu.memory_space<smem>>, %arg6: memref<1x1xf32, #tpu.memory_space<smem>>, %arg7: memref<8x128xf32, #tpu.memory_space<vmem>>) attributes {dimension_semantics = [#tpu.dimension_semantics<parallel>, #tpu.dimension_semantics<arbitrary>], iteration_bounds = array<i64: 1, 1>, scalar_prefetch = 0 : i64, scratch_operands = 0 : i64, tpu.core_type = #tpu.core_type<tc>, window_params = [{transform_indices = @transform_0, window_bounds = array<i64: 8, 128>}, {transform_indices = @transform_1, window_bounds = array<i64: 8, 128>}, {transform_indices = @transform_2, window_bounds = array<i64: 8, 128>}, {transform_indices = @transform_3, window_bounds = array<i64: 1, 1>}, {transform_indices = @transform_4, window_bounds = array<i64: 1, 1>}, {transform_indices = @transform_5, window_bounds = array<i64: 8, 128>}]} {
    %c0_i32 = arith.constant 0 : i32
    %0 = arith.cmpi eq, %arg1, %c0_i32 : i32
    %1 = arith.extui %0 : i1 to i32
    %c0_i32_0 = arith.constant 0 : i32
    %2 = arith.cmpi ne, %1, %c0_i32_0 : i32
    scf.if %2 {
      %cst_22 = arith.constant 0.000000e+00 : f32
      %47 = vector.broadcast %cst_22 : f32 to vector<8x128xf32>
      %c0_23 = arith.constant 0 : index
      %c0_24 = arith.constant 0 : index
      %48 = vector.load %arg7[%c0_23, %c0_24] : memref<8x128xf32, #tpu.memory_space<vmem>>, vector<8x128xf32>
      tpu.vector_store %arg7[%c0_23, %c0_24], %47 {strides = array<i32>} : memref<8x128xf32, #tpu.memory_space<vmem>>, vector<8x128xf32>,
    } else {
    }
    %c0 = arith.constant 0 : index
    %c0_1 = arith.constant 0 : index
    %3 = vector.load %arg2[%c0, %c0_1] : memref<8x128xf32, #tpu.memory_space<vmem>>, vector<8x128xf32>
    %c0_2 = arith.constant 0 : index
    %c0_3 = arith.constant 0 : index
    %4 = vector.load %arg3[%c0_2, %c0_3] : memref<8x128xf32, #tpu.memory_space<vmem>>, vector<8x128xf32>
    %c0_4 = arith.constant 0 : index
    %c0_5 = arith.constant 0 : index
    %5 = vector.load %arg4[%c0_4, %c0_5] : memref<8x128xf32, #tpu.memory_space<vmem>>, vector<8x128xf32>
    %c0_6 = arith.constant 0 : index
    %c0_7 = arith.constant 0 : index
    %6 = memref.load %arg6[%c0_6, %c0_7] : memref<1x1xf32, #tpu.memory_space<smem>>
    %7 = vector.broadcast %6 : f32 to vector<8x128xf32>
    %8 = arith.mulf %5, %7 : vector<8x128xf32>
    %c0_8 = arith.constant 0 : index
    %c0_9 = arith.constant 0 : index
    %9 = memref.load %arg5[%c0_8, %c0_9] : memref<1x1xf32, #tpu.memory_space<smem>>
    %10 = vector.broadcast %9 : f32 to vector<8x128xf32>
    %11 = arith.addf %8, %10 : vector<8x128xf32>
    %12 = arith.subf %3, %4 : vector<8x128xf32>
    %13 = arith.mulf %12, %12 : vector<8x128xf32>
    %cst = arith.constant 0.000000e+00 : f32
    %14 = vector.broadcast %cst : f32 to vector<8x128xf32>
    %15 = arith.subf %14, %3 : vector<8x128xf32>
    %16 = arith.subf %15, %11 : vector<8x128xf32>
    %cst_10 = arith.constant 0.000000e+00 : f32
    %17 = vector.broadcast %cst_10 : f32 to vector<8x128xf32>
    %18 = arith.maximumf %16, %17 : vector<8x128xf32>
    %cst_11 = arith.constant 5.000000e-01 : f32
    %19 = vector.broadcast %cst_11 : f32 to vector<8x128xf32>
    %20 = arith.mulf %19, %18 : vector<8x128xf32>
    %21 = arith.addf %13, %20 : vector<8x128xf32>
    %cst_12 = arith.constant 2.000000e+00 : f32
    %22 = vector.broadcast %cst_12 : f32 to vector<8x128xf32>
    %23 = arith.mulf %22, %11 : vector<8x128xf32>
    %24 = arith.subf %3, %23 : vector<8x128xf32>
    %cst_13 = arith.constant 0.000000e+00 : f32
    %25 = vector.broadcast %cst_13 : f32 to vector<8x128xf32>
    %26 = arith.maximumf %24, %25 : vector<8x128xf32>
    %cst_14 = arith.constant 5.000000e-01 : f32
    %27 = vector.broadcast %cst_14 : f32 to vector<8x128xf32>
    %28 = arith.mulf %27, %26 : vector<8x128xf32>
    %29 = arith.addf %21, %28 : vector<8x128xf32>
    %c1_i32 = arith.constant 1 : i32
    %30 = arith.muli %arg0, %c1_i32 : i32
    %31 = arith.addi %30, %arg1 : i32
    %c8_i32 = arith.constant 8 : i32
    %32 = arith.muli %31, %c8_i32 : i32
    %33 = tpu.iota {dimensions = array<i32: 0>} : vector<8x1xi32>
    %34 = vector.broadcast %32 : i32 to vector<8x1xi32>
    %35 = arith.addi %34, %33 : vector<8x1xi32>
    %c8_i32_15 = arith.constant 8 : i32
    %36 = vector.broadcast %c8_i32_15 : i32 to vector<8x1xi32>
    %37 = arith.cmpi slt, %35, %36 : vector<8x1xi32>
    %cst_16 = arith.constant 0.000000e+00 : f32
    %38 = vector.shape_cast %37 : vector<8x1xi1> to vector<8x1xi1>
    %39 = vector.broadcast %38 : vector<8x1xi1> to vector<8x128xi1>
    %40 = vector.broadcast %cst_16 : f32 to vector<8x128xf32>
    %41 = arith.select %39, %29, %40 : vector<8x128xi1>, vector<8x128xf32>
    %c0_17 = arith.constant 0 : index
    %c0_18 = arith.constant 0 : index
    %42 = vector.load %arg7[%c0_17, %c0_18] : memref<8x128xf32, #tpu.memory_space<vmem>>, vector<8x128xf32>
    %43 = vector.shape_cast %41 : vector<8x128xf32> to vector<1x8x128xf32>
    %cst_19 = arith.constant dense<0.000000e+00> : vector<8x128xf32>
    %44 = vector.multi_reduction <add>, %43, %cst_19 [0] : vector<1x8x128xf32> to vector<8x128xf32>
    %45 = arith.addf %42, %44 : vector<8x128xf32>
    %c0_20 = arith.constant 0 : index
    %c0_21 = arith.constant 0 : index
    %46 = vector.load %arg7[%c0_20, %c0_21] : memref<8x128xf32, #tpu.memory_space<vmem>>, vector<8x128xf32>
    tpu.vector_store %arg7[%c0_20, %c0_21], %45 {strides = array<i32>} : memref<8x128xf32, #tpu.memory_space<vmem>>, vector<8x128xf32>,
    return
  }
  func.func @transform_0(%arg0: i32, %arg1: i32) -> (i32, i32) {
    %c1_i32 = arith.constant 1 : i32
    %0 = arith.muli %arg0, %c1_i32 : i32
    %1 = arith.addi %0, %arg1 : i32
    %c0_i32 = arith.constant 0 : i32
    %2 = arith.minsi %1, %c0_i32 : i32
    %c0_i32_0 = arith.constant 0 : i32
    %c0_i32_1 = arith.constant 0 : i32
    return %2, %c0_i32_0 : i32, i32
  }
  func.func @transform_1(%arg0: i32, %arg1: i32) -> (i32, i32) {
    %c1_i32 = arith.constant 1 : i32
    %0 = arith.muli %arg0, %c1_i32 : i32
    %1 = arith.addi %0, %arg1 : i32
    %c0_i32 = arith.constant 0 : i32
    %2 = arith.minsi %1, %c0_i32 : i32
    %c0_i32_0 = arith.constant 0 : i32
    %c0_i32_1 = arith.constant 0 : i32
    return %2, %c0_i32_0 : i32, i32
  }
  func.func @transform_2(%arg0: i32, %arg1: i32) -> (i32, i32) {
    %c1_i32 = arith.constant 1 : i32
    %0 = arith.muli %arg0, %c1_i32 : i32
    %1 = arith.addi %0, %arg1 : i32
    %c0_i32 = arith.constant 0 : i32
    %2 = arith.minsi %1, %c0_i32 : i32
    %c0_i32_0 = arith.constant 0 : i32
    %c0_i32_1 = arith.constant 0 : i32
    return %2, %c0_i32_0 : i32, i32
  }
  func.func @transform_3(%arg0: i32, %arg1: i32) -> (i32, i32) {
    %c0_i32 = arith.constant 0 : i32
    %c0_i32_0 = arith.constant 0 : i32
    %c0_i32_1 = arith.constant 0 : i32
    return %c0_i32, %c0_i32_0 : i32, i32
  }
  func.func @transform_4(%arg0: i32, %arg1: i32) -> (i32, i32) {
    %c0_i32 = arith.constant 0 : i32
    %c0_i32_0 = arith.constant 0 : i32
    %c0_i32_1 = arith.constant 0 : i32
    return %c0_i32, %c0_i32_0 : i32, i32
  }
  func.func @transform_5(%arg0: i32, %arg1: i32) -> (i32, i32) {
    %c0_i32 = arith.constant 0 : i32
    %c0_i32_0 = arith.constant 0 : i32
    return %arg0, %c0_i32 : i32, i32
  }
}

</mosaic_0001>

<llo_original>
// kernel: geomse_loss_pallas.1
$region0: #{geomse_loss_pallas.1}
  #allocation0 [shape = 'u32[]', space=smem, size = 0x4, offset = 0x4, fixed_abs, tag = 'smem constant byte address 0x4 - core index']
  #allocation1 [shape = 'u32[144,128]{1,0:T(1,128)}', space=vmem, size = 0x12000, scoped, tag = 'internal scratch']
  #allocation2 [shape = 'f32[1,1]{1,0:T(1,128)S(6)}', space=smem, size = 0x200, scoped, tag = 'scoped memory for geomse_loss_pallas.1']
  #allocation3 [shape = 'f32[1,1]{1,0:T(1,128)S(6)}', space=smem, size = 0x200, scoped, tag = 'scoped memory for geomse_loss_pallas.1']
  %s0 = inlined_call_operand.vmem [shape: f32[8,128], index: 0, kind: input, shape index: {}]
  %s1 = inlined_call_operand.vmem [shape: f32[8,128], index: 1, kind: input, shape index: {}]
  %s2 = inlined_call_operand.hbm [shape: f32[8,128], index: 2, kind: input, shape index: {}]
  %s3 = inlined_call_operand.<no memory space> [shape: f32[1,1], index: 3, kind: input, shape index: {}]
  %s4 = inlined_call_operand.<no memory space> [shape: f32[1,1], index: 4, kind: input, shape index: {}]
  %s5 = inlined_call_operand.vmem [shape: f32[8,128], index: 5, kind: output, shape index: {}]
  %s6 = sld [smem:[#allocation0]]
  $region38: #{geomse_loss_pallas.1} parent=0
    _
  %s8 = ssub.s32 1, %s6
  %s9 = scalar_select 0, %s8, %s6
  %10 = sst [smem:[#allocation2]] %s3
  %11 = sst [smem:[#allocation3]] %s4
  $region1: #{geomse_loss_pallas.1} parent=0
    #allocation4 [shape = 'u8[4096]{0}', space=vmem, size = 0x1000, scoped, tag = 'input window, operand 2, single buffered']
    #allocation5 [shape = 's32[1]{0}', space=sflag, size = 0x4, scoped, tag = 'scoped memory for geomse_loss_pallas.1']
    %12 = vsyncpa [#allocation5], 0
    // Predicated region
    $region2: #{geomse_loss_pallas.1} parent=1 // pred_check
      _
    $region3: #{geomse_loss_pallas.1} parent=1 // pred_check_branch
      %14 = sbr.rel (0) target = $region5
    $region4: #{geomse_loss_pallas.1} parent=1 // pred_region
      %s15 = sadd.s32 0, 0
      %p16 = scmp.lt.s32.totalorder %s15, 0
      %s17 = scalar_select %p16, %s15, 0
      %p18 = scmp.lt.s32.totalorder %s17, 0
      %s19 = scalar_select %p18, %s17, 0
      %s20 = smul.addr %s19, 8
      %s21 = scalar_lea.vmem %s0, %s20
      %s22 = sadd.s32 0, 0
      %p23 = scmp.lt.s32.totalorder %s22, 0
      %s24 = scalar_select %p23, %s22, 0
    $region5: #{geomse_loss_pallas.1} parent=1 // pred_fallthru
      _
    // Predicated region
    $region6: #{geomse_loss_pallas.1} parent=1 // pred_check
      _
    $region7: #{geomse_loss_pallas.1} parent=1 // pred_check_branch
      %26 = sbr.rel (0) target = $region9
    $region8: #{geomse_loss_pallas.1} parent=1 // pred_region
      %s27 = sadd.s32 0, 0
      %p28 = scmp.lt.s32.totalorder %s27, 0
      %s29 = scalar_select %p28, %s27, 0
      %p30 = scmp.lt.s32.totalorder %s29, 0
      %s31 = scalar_select %p30, %s29, 0
      %s32 = smul.addr %s31, 8
      %s33 = scalar_lea.vmem %s1, %s32
      %s34 = sadd.s32 0, 0
      %p35 = scmp.lt.s32.totalorder %s34, 0
      %s36 = scalar_select %p35, %s34, 0
    $region9: #{geomse_loss_pallas.1} parent=1 // pred_fallthru
      _
    // Predicated region
    $region10: #{geomse_loss_pallas.1} parent=1 // pred_check
      _
    $region11: #{geomse_loss_pallas.1} parent=1 // pred_check_branch
      %38 = sbr.rel (0) target = $region13
    $region12: #{geomse_loss_pallas.1} parent=1 // pred_region
      %s39 = sadd.s32 0, 0
      %p40 = scmp.lt.s32.totalorder %s39, 0
      %s41 = scalar_select %p40, %s39, 0
      %s43 = ssub.s32 128, 128
      %44 = vsyncadd [#allocation5], %s43
      %s45 = smul.addr %s41, 128
      %s46 = scalar_lea.hbm %s2, %s45
      %s48 = sshll.u32 [#allocation4], 4
      %s49 = int_to_ptr.vmem [resolvable:$true] %s48
      %51 = dma.hbm_to_vmem [thread:$0]  %s46, 128, %s49, [#allocation5]
    $region13: #{geomse_loss_pallas.1} parent=1 // pred_fallthru
      _
    // Predicated region
    $region14: #{geomse_loss_pallas.1} parent=1 // pred_check
      _
    $region15: #{geomse_loss_pallas.1} parent=1 // pred_check_branch
      %53 = sbr.rel (0) target = $region17
    $region16: #{geomse_loss_pallas.1} parent=1 // pred_region
      _
    $region17: #{geomse_loss_pallas.1} parent=1 // pred_fallthru
      _
    // Predicated region
    $region18: #{geomse_loss_pallas.1} parent=1 // pred_check
      _
    $region19: #{geomse_loss_pallas.1} parent=1 // pred_check_branch
      %55 = sbr.rel (0) target = $region21
    $region20: #{geomse_loss_pallas.1} parent=1 // pred_region
      _
    $region21: #{geomse_loss_pallas.1} parent=1 // pred_fallthru
      _
    // Predicated region
    $region22: #{geomse_loss_pallas.1} parent=1 // pred_check
      _
    $region23: #{geomse_loss_pallas.1} parent=1 // pred_check_branch
      %57 = sbr.rel (0) target = $region25
    $region24: #{geomse_loss_pallas.1} parent=1 // pred_region
      %58 = dma.done [#allocation5], 128
    $region25: #{geomse_loss_pallas.1} parent=1 // pred_fallthru
      _
    %s59 = sadd.s32 0, 0
    %p60 = scmp.lt.s32.totalorder %s59, 0
    %s61 = scalar_select %p60, %s59, 0
    %p62 = scmp.lt.s32.totalorder %s61, 0
    %s63 = scalar_select %p62, %s61, 0
    %s64 = smul.addr %s63, 8
    %s65 = scalar_lea.vmem %s0, %s64
    %s66 = sadd.s32 0, 0
    %p67 = scmp.lt.s32.totalorder %s66, 0
    %s68 = scalar_select %p67, %s66, 0
    %p69 = scmp.lt.s32.totalorder %s68, 0
    %s70 = scalar_select %p69, %s68, 0
    %s71 = smul.addr %s70, 8
    %s72 = scalar_lea.vmem %s1, %s71
    %s73 = sadd.s32 0, 0
    %p74 = scmp.lt.s32.totalorder %s73, 0
    %s75 = scalar_select %p74, %s73, 0
    %p76 = scmp.lt.s32.totalorder %s75, 0
    %s77 = scalar_select %p76, %s75, 0
    %s78 = smul.addr %s77, 8
    %s79 = scalar_lea.vmem %s0, %s78
    %s80 = sadd.s32 0, 0
    %p81 = scmp.lt.s32.totalorder %s80, 0
    %s82 = scalar_select %p81, %s80, 0
    %s83 = sadd.s32 0, 0
    %p84 = scmp.lt.s32.totalorder %s83, 0
    %s85 = scalar_select %p84, %s83, 0
    %p86 = scmp.lt.s32.totalorder %s85, 0
    %s87 = scalar_select %p86, %s85, 0
    %s88 = smul.addr %s87, 8
    %s89 = scalar_lea.vmem %s1, %s88
    %s90 = sadd.s32 0, 0
    %p91 = scmp.lt.s32.totalorder %s90, 0
    %s92 = scalar_select %p91, %s90, 0
    %s93 = sadd.s32 0, 0
    %p94 = scmp.lt.s32.totalorder %s93, 0
    %s95 = scalar_select %p94, %s93, 0
    %p96 = scmp.eq.s32.totalorder 0, 0
    // Predicated region
    $region26: #{geomse_loss_pallas.1} parent=1 // pred_check
      %p97 = pneg %p96
    $region27: #{geomse_loss_pallas.1} parent=1 // pred_check_branch
      %99 = sbr.rel (%p97) target = $region29
    $region28: #{geomse_loss_pallas.1} parent=1 // pred_region
      %100 = vst [vmem:[%s5] sm:$0xff] 0.0
    $region29: #{geomse_loss_pallas.1} parent=1 // pred_fallthru
      _
    %v101 = vld [vmem:[%s79] sm:$0xff]
    %v102 = vld [vmem:[%s89] sm:$0xff]
    %v103 = vld [vmem:[#allocation4] sm:$0xff]
    %s104 = sld [smem:[#allocation3]]
    %v105 = vstv %s104
    %v106 = vmul.f32 %v103, %v105
    %s107 = sld [smem:[#allocation2]]
    %v108 = vstv %s107
    %v109 = vadd.f32 %v106, %v108
    %v110 = vsub.f32 %v101, %v102
    %v111 = vmul.f32 %v110, %v110
    %v112 = vsub.f32 0.0, %v101
    %v113 = vsub.f32 %v112, %v109
    %v114 = vmax.f32 %v113, 0.0
    %v115 = vmul.f32 %v114, 0.5
    %v116 = vadd.f32 %v111, %v115
    %v117 = vmul.f32 %v109, 2.0
    %v118 = vsub.f32 %v101, %v117
    %v119 = vmax.f32 %v118, 0.0
    %v120 = vmul.f32 %v119, 0.5
    %v121 = vadd.f32 %v116, %v120
    %s122 = sadd.s32 0, 0
    %s123 = smul.u32 %s122, 8
    %v124 = vlaneseq
    %v125 = vshrl.u32 %v124, 7
    %v126 = vstv %s123
    %v127 = vadd.s32 %v126, %v125
    %vm128 = vcmp.lt.s32.totalorder %v127, 8
    %v129 = vsel %vm128, 1, 0
    %vm130 = vcmp.eq.s32.totalorder %v129, 1
    %v131 = vsel %vm130, %v121, 0.0
    %v132 = vld [vmem:[%s5] sm:$0xff]
    %v133 = vadd.f32 %v131, 0.0
    %v134 = vadd.f32 %v132, %v133
    %135 = vst [vmem:[%s5] sm:$0xff] %v134
    // Predicated region
    $region30: #{geomse_loss_pallas.1} parent=1 // pred_check
      _
    $region31: #{geomse_loss_pallas.1} parent=1 // pred_check_branch
      %137 = sbr.rel (0) target = $region33
    $region32: #{geomse_loss_pallas.1} parent=1 // pred_region
      _
    $region33: #{geomse_loss_pallas.1} parent=1 // pred_fallthru
      _
    // Predicated region
    $region34: #{geomse_loss_pallas.1} parent=1 // pred_check
      _
    $region35: #{geomse_loss_pallas.1} parent=1 // pred_check_branch
      %139 = sbr.rel (0) target = $region37
    $region36: #{geomse_loss_pallas.1} parent=1 // pred_region
      _
    $region37: #{geomse_loss_pallas.1} parent=1 // pred_fallthru
      _
    %140 = vsyncpa [#allocation5], 1

</llo_original>
